<compile_context>
chip_gen: v7x
topology: tpu7x:2x2x1
jax: 0.10.0
libtpu: 0.0.40
codegen_flags: <defaults>
</compile_context>

<pallas_src>
import functools

import jax
import jax.numpy as jnp
from jax import lax
from jax.experimental import pallas as pl
from jax.experimental.pallas import tpu as pltpu


NUM_CORE_SLICES = 2  # leading "parallel" grid axis -> both TensorCores on v7x

_SUBLANE = {1: 32, 2: 16, 4: 8}  # packed sublane tile per itemsize


def _focal_weight(one_minus_p, gamma):
    g = float(gamma)
    if g == round(g) and 0.0 <= g <= 8.0:
        # Integer gamma (default 2.0): repeated VPU multiply, no EUP pow.
        w = jnp.ones_like(one_minus_p)
        for _ in range(int(round(g))):
            w = w * one_minus_p
        return w
    return jnp.power(one_minus_p, g)  # only (chunk, 1) wide


def focal_loss_kernel(logits_ref, target_ref, out_ref, acc_ref, *,
                      gamma, n_rows, tile_n, chunk_n, blocks_per_slice):
    """Grid = (core_slice, tile). One step = one (tile_n, C) row-tile."""
    ci = pl.program_id(0)   # core-slice index ("parallel")
    ti = pl.program_id(1)   # tile index within the slice ("arbitrary")

    @pl.when(ti == 0)
    def _init():
        acc_ref[...] = jnp.zeros_like(acc_ref)

    num_classes = logits_ref.shape[-1]
    # Unclamped logical row offset of this tile. The index_map clamps the DMA
    # block index, but the mask below uses logical rows, so clamped/duplicate
    # blocks and the garbage tail of the last partial block contribute 0.
    tile_row0 = (ci * blocks_per_slice + ti) * tile_n

    def add_chunk(r0):
        x = logits_ref[pl.ds(r0, chunk_n), :].astype(jnp.float32)      # (chunk, C)
        # Numerically stable log-sum-exp along the class (lane) axis.
        m = jnp.max(x, axis=-1, keepdims=True)
        shifted = x - m
        lse = jnp.log(jnp.sum(jnp.exp(shifted), axis=-1, keepdims=True))  # (chunk, 1)
        # Gather shifted logit at the target class (where + lane reduce).
        tgt = target_ref[pl.ds(r0, chunk_n), :]                          # (chunk, 1)
        class_ids = lax.broadcasted_iota(jnp.int32, (chunk_n, num_classes), 1)
        shifted_t = jnp.sum(jnp.where(class_ids == tgt, shifted, 0.0),
                            axis=-1, keepdims=True)                      # (chunk, 1)
        # Focal term only on the gathered column.
        log_p_t = shifted_t - lse
        p_t = jnp.exp(log_p_t)
        one_minus = jnp.maximum(1.0 - p_t, 0.0)   # clamp fp slop where p_t > 1
        focal_t = _focal_weight(one_minus, gamma) * log_p_t              # (chunk, 1)
        # Mask rows past the true batch size (partial / duplicated blocks).
        rows = tile_row0 + r0 + lax.broadcasted_iota(jnp.int32, (chunk_n, 1), 0)
        acc_ref[...] += jnp.where(rows < n_rows, focal_t, 0.0)

    n_chunks = tile_n // chunk_n
    if n_chunks == 1:
        add_chunk(0)
    else:
        def body(k, carry):
            add_chunk(pl.multiple_of(k * chunk_n, chunk_n))
            return carry
        lax.fori_loop(0, n_chunks, body, 0, unroll=n_chunks <= 8)

    @pl.when(ti == pl.num_programs(1) - 1)
    def _finalize():
        # weight=None, reduction='sum'  =>  loss = -sum_rows focal[r, target[r]]
        # TODO(synk): per-class `weight` vector and 'mean'/'none' reductions not
        # wired in (module defaults are weight=None, reduction='sum').
        total = -jnp.sum(acc_ref[...])
        out_ref[...] = jnp.full(out_ref.shape, total, dtype=jnp.float32)


def _auto_tiling(num_classes, itemsize):
    """Pick (tile_n, chunk_n) so inputs + f32 temporaries fit scoped VMEM."""
    c_pad = ((num_classes + 127) // 128) * 128
    sub = _SUBLANE.get(itemsize, 8)
    # chunk_n: ~2 MiB of live f32 temporaries (~4 full-width (chunk, c_pad) f32
    # arrays: upcast, shifted, exp, where-select), capped at 512 rows.
    f32_bytes_per_row = 4 * c_pad * 4
    chunk = max(sub, min(512, (2 * 1024 * 1024) // f32_bytes_per_row))
    chunk = max(sub, (chunk // sub) * sub)
    # tile_n (DMA block): ~4 MiB per logits buffer (double-buffered), native
    # dtype + lane-padded int32 targets; capped at 8 chunks (unrolled loop).
    in_bytes_per_row = c_pad * itemsize + 128 * 4
    tile = min(8 * chunk, max(chunk, (4 * 1024 * 1024) // in_bytes_per_row))
    tile = max(chunk, (tile // chunk) * chunk)
    return tile, chunk


def focal_loss(logits, targets, gamma=2.0, tile_n=None, chunk_n=None):
    n, num_classes = logits.shape
    itemsize = jnp.dtype(logits.dtype).itemsize
    sub = _SUBLANE.get(itemsize, 8)
    auto_tile, auto_chunk = _auto_tiling(num_classes, itemsize)
    if tile_n is None:
        tile_n = auto_tile
    if chunk_n is None:
        chunk_n = auto_chunk

    if tile_n >= n:
        tile_n = n              # single full-dim block: exempt from (8,128) rule
        chunk_n = n
    else:
        tile_n = max(sub, (tile_n // sub) * sub)       # packed-sublane aligned
        chunk_n = max(sub, (min(chunk_n, tile_n) // sub) * sub)
        tile_n = max(chunk_n, (tile_n // chunk_n) * chunk_n)  # multiple of chunk

    total_blocks = pl.cdiv(n, tile_n)
    blocks_per_slice = pl.cdiv(total_blocks, NUM_CORE_SLICES)

    # TODO(synk): for C << 128 a wrapper-side fold of 128//C rows into the lane
    # dim would improve lane utilization / DMA burst length; not applied here.

    targets2d = targets.reshape(n, 1).astype(jnp.int32)

    def blk_map(ci, ti):
        # Clamp so the DMA never starts past the array; duplicated blocks are
        # fully masked out in the kernel via the logical row index.
        b = jnp.minimum(ci * blocks_per_slice + ti, total_blocks - 1)
        return (b, 0)

    kernel = functools.partial(
        focal_loss_kernel, gamma=gamma, n_rows=n, tile_n=tile_n,
        chunk_n=chunk_n, blocks_per_slice=blocks_per_slice)

    out = pl.pallas_call(
        kernel,
        out_shape=jax.ShapeDtypeStruct((NUM_CORE_SLICES, 1, 128), jnp.float32),
        grid_spec=pltpu.PrefetchScalarGridSpec(
            num_scalar_prefetch=0,
            grid=(NUM_CORE_SLICES, blocks_per_slice),
            in_specs=[
                pl.BlockSpec((tile_n, num_classes), blk_map),
                pl.BlockSpec((tile_n, 1), blk_map),
            ],
            out_specs=pl.BlockSpec((1, 1, 128), lambda ci, ti: (ci, 0, 0)),
            scratch_shapes=[pltpu.VMEM((chunk_n, 1), jnp.float32)],
        ),
        compiler_params=pltpu.CompilerParams(
            # rows split across cores ("parallel"); reduction axis last.
            dimension_semantics=("parallel", "arbitrary"),
            vmem_limit_bytes=32 * 1024 * 1024,
        ),
    )(logits, targets2d)
    # One partial sum per core-slice; combine on the host side of the kernel.
    return jnp.sum(out[:, 0, 0])


def focal_loss_ref(logits, targets, gamma=2.0):
    log_prob = jax.nn.log_softmax(logits.astype(jnp.float32), axis=-1)
    prob = jnp.exp(log_prob)
    focal = jnp.power(1.0 - prob, gamma) * log_prob
    picked = jnp.take_along_axis(focal, targets[:, None], axis=-1)[:, 0]
    return -jnp.sum(picked)


if __name__ == "__main__":
    key = jax.random.PRNGKey(0)
    k_logits, k_tgt = jax.random.split(key)

    # Small shapes: batch=50, num_classes=32.
    N, C = 50, 32
    logits = jax.random.normal(k_logits, (N, C), dtype=jnp.float32)
    targets = jax.random.randint(k_tgt, (N,), 0, C, dtype=jnp.int32)

    ref = focal_loss_ref(logits, targets, gamma=2.0)

    # Multi-tile path: tile_n=16 -> 4 row blocks, 2 per core-slice, last block
    # partial (exercises both core-slices, the clamp and the row mask).
    loss_tiled = focal_loss(logits, targets, gamma=2.0, tile_n=16)
    jax.block_until_ready(loss_tiled)
    assert jnp.allclose(loss_tiled, ref, rtol=1e-5, atol=1e-5), (loss_tiled, ref)

    # Auto-tiled path (single full-dim block; second core-slice fully masked).
    loss_auto = focal_loss(logits, targets, gamma=2.0)
    jax.block_until_ready(loss_auto)
    assert jnp.allclose(loss_auto, ref, rtol=1e-5, atol=1e-5), (loss_auto, ref)

    print("KERNEL_OK")
</pallas_src>

<mosaic_0001>
module attributes {stable_mosaic.version = 11 : i64} {
  func.func @focal_loss_kernel(%arg0: i32, %arg1: i32, %arg2: memref<16x32xf32, #tpu.memory_space<vmem>>, %arg3: memref<16x1xi32, #tpu.memory_space<vmem>>, %arg4: memref<1x1x128xf32, #tpu.memory_space<vmem>>, %arg5: memref<16x1xf32, #tpu.memory_space<vmem>>) attributes {dimension_semantics = [#tpu.dimension_semantics<parallel>, #tpu.dimension_semantics<arbitrary>], iteration_bounds = array<i64: 2, 2>, scalar_prefetch = 0 : i64, scratch_operands = 1 : i64, tpu.core_type = #tpu.core_type<tc>, window_params = [{transform_indices = @transform_0, window_bounds = array<i64: 16, 32>}, {transform_indices = @transform_1, window_bounds = array<i64: 16, 1>}, {transform_indices = @transform_2, window_bounds = array<i64: 1, 1, 128>}]} {
    %c0_i32 = arith.constant 0 : i32
    %0 = arith.cmpi eq, %arg1, %c0_i32 : i32
    %1 = arith.extui %0 : i1 to i32
    %c0_i32_0 = arith.constant 0 : i32
    %2 = arith.cmpi ne, %1, %c0_i32_0 : i32
    scf.if %2 {
      %cst_17 = arith.constant 0.000000e+00 : f32
      %47 = vector.broadcast %cst_17 : f32 to vector<16x1xf32>
      %c0_18 = arith.constant 0 : index
      %c0_19 = arith.constant 0 : index
      %48 = vector.load %arg5[%c0_18, %c0_19] : memref<16x1xf32, #tpu.memory_space<vmem>>, vector<16x1xf32>
      tpu.vector_store %arg5[%c0_18, %c0_19], %47 {strides = array<i32>} : memref<16x1xf32, #tpu.memory_space<vmem>>, vector<16x1xf32>,
    } else {
    }
    %c2_i32 = arith.constant 2 : i32
    %3 = arith.muli %arg0, %c2_i32 : i32
    %4 = arith.addi %3, %arg1 : i32
    %c16_i32 = arith.constant 16 : i32
    %5 = arith.muli %4, %c16_i32 : i32
    %c0 = arith.constant 0 : index
    %c0_1 = arith.constant 0 : index
    %6 = vector.load %arg2[%c0, %c0_1] : memref<16x32xf32, #tpu.memory_space<vmem>>, vector<16x32xf32>
    %cst = arith.constant dense<0xFF800000> : vector<16xf32>
    %7 = vector.multi_reduction <maximumf>, %6, %cst [1] : vector<16x32xf32> to vector<16xf32>
    %8 = vector.shape_cast %7 : vector<16xf32> to vector<16x1xf32>
    %9 = vector.broadcast %8 : vector<16x1xf32> to vector<16x32xf32>
    %10 = arith.subf %6, %9 : vector<16x32xf32>
    %11 = math.exp %10 : vector<16x32xf32>
    %cst_2 = arith.constant dense<0.000000e+00> : vector<16xf32>
    %12 = vector.multi_reduction <add>, %11, %cst_2 [1] : vector<16x32xf32> to vector<16xf32>
    %13 = vector.shape_cast %12 : vector<16xf32> to vector<16x1xf32>
    %14 = math.log %13 : vector<16x1xf32>
    %c0_3 = arith.constant 0 : index
    %c0_4 = arith.constant 0 : index
    %15 = vector.load %arg3[%c0_3, %c0_4] : memref<16x1xi32, #tpu.memory_space<vmem>>, vector<16x1xi32>
    %16 = tpu.iota {dimensions = array<i32: 1>} : vector<16x32xi32>
    %17 = vector.broadcast %15 : vector<16x1xi32> to vector<16x32xi32>
    %18 = arith.cmpi eq, %16, %17 : vector<16x32xi32>
    %cst_5 = arith.constant 0.000000e+00 : f32
    %19 = vector.broadcast %cst_5 : f32 to vector<16x32xf32>
    %20 = arith.select %18, %10, %19 : vector<16x32xi1>, vector<16x32xf32>
    %cst_6 = arith.constant dense<0.000000e+00> : vector<16xf32>
    %21 = vector.multi_reduction <add>, %20, %cst_6 [1] : vector<16x32xf32> to vector<16xf32>
    %22 = vector.shape_cast %21 : vector<16xf32> to vector<16x1xf32>
    %23 = arith.subf %22, %14 : vector<16x1xf32>
    %24 = math.exp %23 : vector<16x1xf32>
    %cst_7 = arith.constant 1.000000e+00 : f32
    %25 = vector.broadcast %cst_7 : f32 to vector<16x1xf32>
    %26 = arith.subf %25, %24 : vector<16x1xf32>
    %cst_8 = arith.constant 0.000000e+00 : f32
    %27 = vector.broadcast %cst_8 : f32 to vector<16x1xf32>
    %28 = arith.maximumf %26, %27 : vector<16x1xf32>
    %cst_9 = arith.constant 1.000000e+00 : f32
    %29 = vector.broadcast %cst_9 : f32 to vector<16x1xf32>
    %30 = arith.mulf %29, %28 : vector<16x1xf32>
    %31 = arith.mulf %30, %28 : vector<16x1xf32>
    %32 = arith.mulf %31, %23 : vector<16x1xf32>
    %c0_i32_10 = arith.constant 0 : i32
    %33 = arith.addi %5, %c0_i32_10 : i32
    %34 = tpu.iota {dimensions = array<i32: 0>} : vector<16x1xi32>
    %35 = vector.broadcast %33 : i32 to vector<16x1xi32>
    %36 = arith.addi %35, %34 : vector<16x1xi32>
    %c0_11 = arith.constant 0 : index
    %c0_12 = arith.constant 0 : index
    %37 = vector.load %arg5[%c0_11, %c0_12] : memref<16x1xf32, #tpu.memory_space<vmem>>, vector<16x1xf32>
    %c50_i32 = arith.constant 50 : i32
    %38 = vector.broadcast %c50_i32 : i32 to vector<16x1xi32>
    %39 = arith.cmpi slt, %36, %38 : vector<16x1xi32>
    %cst_13 = arith.constant 0.000000e+00 : f32
    %40 = vector.broadcast %cst_13 : f32 to vector<16x1xf32>
    %41 = arith.select %39, %32, %40 : vector<16x1xi1>, vector<16x1xf32>
    %42 = arith.addf %37, %41 : vector<16x1xf32>
    %c0_14 = arith.constant 0 : index
    %c0_15 = arith.constant 0 : index
    %43 = vector.load %arg5[%c0_14, %c0_15] : memref<16x1xf32, #tpu.memory_space<vmem>>, vector<16x1xf32>
    tpu.vector_store %arg5[%c0_14, %c0_15], %42 {strides = array<i32>} : memref<16x1xf32, #tpu.memory_space<vmem>>, vector<16x1xf32>,
    %c1_i32 = arith.constant 1 : i32
    %44 = arith.cmpi eq, %arg1, %c1_i32 : i32
    %45 = arith.extui %44 : i1 to i32
    %c0_i32_16 = arith.constant 0 : i32
    %46 = arith.cmpi ne, %45, %c0_i32_16 : i32
    scf.if %46 {
      %c0_17 = arith.constant 0 : index
      %c0_18 = arith.constant 0 : index
      %47 = vector.load %arg5[%c0_17, %c0_18] : memref<16x1xf32, #tpu.memory_space<vmem>>, vector<16x1xf32>
      %48 = vector.shape_cast %47 : vector<16x1xf32> to vector<1x16x1xf32>
      %cst_19 = arith.constant dense<0.000000e+00> : vector<1xf32>
      %49 = vector.multi_reduction <add>, %48, %cst_19 [1, 2] : vector<1x16x1xf32> to vector<1xf32>
      %50 = vector.shape_cast %49 : vector<1xf32> to vector<1x1x1xf32>
      %51 = vector.extract %50[0, 0, 0] : f32 from vector<1x1x1xf32>
      %cst_20 = arith.constant 0.000000e+00 : f32
      %52 = arith.subf %cst_20, %51 : f32
      %53 = vector.broadcast %52 : f32 to vector<1x1x128xf32>
      %c0_21 = arith.constant 0 : index
      %c0_22 = arith.constant 0 : index
      %c0_23 = arith.constant 0 : index
      %54 = vector.load %arg4[%c0_21, %c0_22, %c0_23] : memref<1x1x128xf32, #tpu.memory_space<vmem>>, vector<1x1x128xf32>
      tpu.vector_store %arg4[%c0_21, %c0_22, %c0_23], %53 {strides = array<i32>} : memref<1x1x128xf32, #tpu.memory_space<vmem>>, vector<1x1x128xf32>,
    } else {
    }
    return
  }
  func.func @transform_0(%arg0: i32, %arg1: i32) -> (i32, i32) {
    %c2_i32 = arith.constant 2 : i32
    %0 = arith.muli %arg0, %c2_i32 : i32
    %1 = arith.addi %0, %arg1 : i32
    %c3_i32 = arith.constant 3 : i32
    %2 = arith.minsi %1, %c3_i32 : i32
    %c0_i32 = arith.constant 0 : i32
    %c0_i32_0 = arith.constant 0 : i32
    return %2, %c0_i32 : i32, i32
  }
  func.func @transform_1(%arg0: i32, %arg1: i32) -> (i32, i32) {
    %c2_i32 = arith.constant 2 : i32
    %0 = arith.muli %arg0, %c2_i32 : i32
    %1 = arith.addi %0, %arg1 : i32
    %c3_i32 = arith.constant 3 : i32
    %2 = arith.minsi %1, %c3_i32 : i32
    %c0_i32 = arith.constant 0 : i32
    %c0_i32_0 = arith.constant 0 : i32
    return %2, %c0_i32 : i32, i32
  }
  func.func @transform_2(%arg0: i32, %arg1: i32) -> (i32, i32, i32) {
    %c0_i32 = arith.constant 0 : i32
    %c0_i32_0 = arith.constant 0 : i32
    %c0_i32_1 = arith.constant 0 : i32
    return %arg0, %c0_i32, %c0_i32_0 : i32, i32, i32
  }
}

</mosaic_0001>

<llo_original>
// kernel: tpu_custom_call.1
$region0: #{tpu_custom_call.1}
  #allocation0 [shape = 'u32[]', space=smem, size = 0x4, offset = 0x4, fixed_abs, tag = 'smem constant byte address 0x4 - core index']
  #allocation1 [shape = 'u32[144,128]{1,0:T(1,128)}', space=vmem, size = 0x12000, scoped, tag = 'internal scratch']
  #allocation2 [shape = 'f32[16,1]{1,0:T(8,128)}', space=vmem, size = 0x2000, scoped, tag = 'scratch operand']
  %s0 = inlined_call_operand.vmem [shape: f32[50,32], index: 0, kind: input, shape index: {}]
  %s1 = inlined_call_operand.vmem [shape: s32[50,1], index: 1, kind: input, shape index: {}]
  %s2 = inlined_call_operand.hbm [shape: f32[2,1,128], index: 2, kind: output, shape index: {}]
  %s3 = sld [smem:[#allocation0]]
  $region49: #{tpu_custom_call.1} parent=0
    _
  %s5 = ssub.s32 1, %s3
  %s6 = scalar_select 0, %s5, %s3
  $region1: #{tpu_custom_call.1} parent=0
    #allocation3 [shape = 'u8[1024]{0}', space=vmem, size = 0x400, scoped, tag = 'output window, operand 0']
    #allocation4 [shape = 's32[2]{0}', space=sflag, size = 0x8, scoped, tag = 'scoped memory for tpu_custom_call.1']
    %7 = vsyncpa [#allocation4], 0
    %s8 = scalar_lea.sflag [#allocation4], 1
    %9 = vsyncpa %s8, 0
    loop: start=0, step=1, limit=6
    $region2: #{tpu_custom_call.1} parent=1 // loop_pre_header
      _
    $region3: #{tpu_custom_call.1} parent=1 // loop_header
      %s11 = sphi 0, %s15
      %p12 = scmp.ge.s32.totalorder %s11, 6
      %s18 = sphi 0, %s30
      %s19 = sphi 0, %s26
      %s20 = sphi 0, %s18
      %s21 = sphi 0, %s19
      %s22 = sphi 0, %s20
      %s23 = sphi 0, %s21
      %s41 = sphi 0, %s43
      %s44 = sphi 0, %s41
      %s45 = sphi 0, %s44
      %s61 = sphi 0, %s45
      %s75 = sphi 0, %s77
      %s78 = sphi 0, %s75
      %s79 = sphi 0, %s78
      %s95 = sphi 0, %s79
      %s101 = sphi 0, %s103
      %s104 = sphi 0, %s101
      %s105 = sphi 0, %s104
      %s121 = sphi 0, %s105
    $region4: #{tpu_custom_call.1} parent=1 // loop_header_branch
      %14 = sbr.rel (%p12) target = $region8
    $region5: #{tpu_custom_call.1} parent=1 // loop_body
      %s16 = ssub.s32 %s11, 1
      %s17 = ssub.s32 %s11, 2
      %s24 = sadd.s32 1, %s19
      %p25 = scmp.ge.s32.totalorder %s24, 2
      %s26 = scalar_select %p25, 0, %s24
      %s27 = sadd.s32 1, %s18
      %s28 = scalar_select %p25, %s27, %s18
      %p29 = scmp.ge.s32.totalorder %s28, 2
      %s30 = scalar_select %p29, 0, %s28
      %s31 = smul.u32 %s18, 2
      %s32 = sadd.s32 %s31, %s19
      %p33 = scmp.lt.s32.totalorder %s32, 3
      %s34 = scalar_select %p33, %s32, 3
      %s35 = smul.u32 %s30, 2
      %s36 = sadd.s32 %s35, %s26
      %p37 = scmp.lt.s32.totalorder %s36, 3
      %s38 = scalar_select %p37, %s36, 3
      %s39 = ssub.s32 %s34, %s38
      %p40 = scmp.eq.s32.totalorder %s39, 0
      %s42 = sadd.s32 %s41, 1
      %s43 = scalar_select %p40, %s41, %s42
      %p46 = pneg %p40
      %p47 = scmp.eq.s32.totalorder %s11, 3
      %p48 = por %p46, %p47
      %p49 = scmp.ne.s32.totalorder %s41, %s44
      %p50 = scmp.eq.s32.totalorder %s11, 0
      %p51 = por %p49, %p50
      %p52 = scmp.ne.s32.totalorder %s41, %s44
      %p53 = scmp.eq.s32.totalorder %s16, 3
      %p54 = por %p52, %p53
      %p55 = scmp.ne.s32.totalorder %s44, %s45
      %p56 = scmp.eq.s32.totalorder %s16, 0
      %p57 = por %p55, %p56
      %p58 = scmp.ne.s32.totalorder %s44, %s45
      %p59 = scmp.eq.s32.totalorder %s17, 3
      %p60 = por %p58, %p59
      %p62 = scmp.ne.s32.totalorder %s45, %s61
      %p63 = scmp.eq.s32.totalorder %s17, 0
      %p64 = por %p62, %p63
      %s65 = smul.u32 %s18, 2
      %s66 = sadd.s32 %s65, %s19
      %p67 = scmp.lt.s32.totalorder %s66, 3
      %s68 = scalar_select %p67, %s66, 3
      %s69 = smul.u32 %s30, 2
      %s70 = sadd.s32 %s69, %s26
      %p71 = scmp.lt.s32.totalorder %s70, 3
      %s72 = scalar_select %p71, %s70, 3
      %s73 = ssub.s32 %s68, %s72
      %p74 = scmp.eq.s32.totalorder %s73, 0
      %s76 = sadd.s32 %s75, 1
      %s77 = scalar_select %p74, %s75, %s76
      %p80 = pneg %p74
      %p81 = scmp.eq.s32.totalorder %s11, 3
      %p82 = por %p80, %p81
      %p83 = scmp.ne.s32.totalorder %s75, %s78
      %p84 = scmp.eq.s32.totalorder %s11, 0
      %p85 = por %p83, %p84
      %p86 = scmp.ne.s32.totalorder %s75, %s78
      %p87 = scmp.eq.s32.totalorder %s16, 3
      %p88 = por %p86, %p87
      %p89 = scmp.ne.s32.totalorder %s78, %s79
      %p90 = scmp.eq.s32.totalorder %s16, 0
      %p91 = por %p89, %p90
      %p92 = scmp.ne.s32.totalorder %s78, %s79
      %p93 = scmp.eq.s32.totalorder %s17, 3
      %p94 = por %p92, %p93
      %p96 = scmp.ne.s32.totalorder %s79, %s95
      %p97 = scmp.eq.s32.totalorder %s17, 0
      %p98 = por %p96, %p97
      %s99 = ssub.s32 %s18, %s30
      %p100 = scmp.eq.s32.totalorder %s99, 0
      %s102 = sadd.s32 %s101, 1
      %s103 = scalar_select %p100, %s101, %s102
      %p106 = pneg %p100
      %p107 = scmp.eq.s32.totalorder %s11, 3
      %p108 = por %p106, %p107
      %p109 = scmp.ne.s32.totalorder %s101, %s104
      %p110 = scmp.eq.s32.totalorder %s11, 0
      %p111 = por %p109, %p110
      %p112 = scmp.ne.s32.totalorder %s101, %s104
      %p113 = scmp.eq.s32.totalorder %s16, 3
      %p114 = por %p112, %p113
      %p115 = scmp.ne.s32.totalorder %s104, %s105
      %p116 = scmp.eq.s32.totalorder %s16, 0
      %p117 = por %p115, %p116
      %p118 = scmp.ne.s32.totalorder %s104, %s105
      %p119 = scmp.eq.s32.totalorder %s17, 3
      %p120 = por %p118, %p119
      %p122 = scmp.ne.s32.totalorder %s105, %s121
      %p123 = scmp.eq.s32.totalorder %s17, 0
      %p124 = por %p122, %p123
      %p125 = scmp.le.s32.totalorder 1, %s11
      %p126 = scmp.lt.s32.totalorder %s11, 5
      %p127 = pnand %p125, %p126
      %p128 = pneg %p127
      // Predicated region
      $region9: #{tpu_custom_call.1} parent=5 // pred_check
        _
      $region10: #{tpu_custom_call.1} parent=5 // pred_check_branch
        %130 = sbr.rel (%p127) target = $region12
      $region11: #{tpu_custom_call.1} parent=5 // pred_region
        %s131 = ssub.s32 %s11, 1
      $region12: #{tpu_custom_call.1} parent=5 // pred_fallthru
        _
      %p132 = scmp.lt.s32.totalorder %s11, 4
      // Predicated region
      $region13: #{tpu_custom_call.1} parent=5 // pred_check
        %p133 = pneg %p132
      $region14: #{tpu_custom_call.1} parent=5 // pred_check_branch
        %135 = sbr.rel (%p133) target = $region16
      $region15: #{tpu_custom_call.1} parent=5 // pred_region
        // Predicated region
        $region17: #{tpu_custom_call.1} parent=15 // pred_check
          %p136 = pneg %p51
        $region18: #{tpu_custom_call.1} parent=15 // pred_check_branch
          %138 = sbr.rel (%p136) target = $region20
        $region19: #{tpu_custom_call.1} parent=15 // pred_region
          %s139 = smul.u32 %s18, 2
          %s140 = sadd.s32 %s139, %s19
          %p141 = scmp.lt.s32.totalorder %s140, 3
          %s142 = scalar_select %p141, %s140, 3
          %s143 = smul.u32 2, %s142
          %s144 = ssub.s32 7, %s143
          %p145 = scmp.lt.s32.totalorder %s144, 2
          %s146 = scalar_select %p145, %s144, 2
          %s147 = smul.u32 128, %s146
          %p148 = scmp.lt.s32.totalorder %s143, 6
          %s149 = scalar_select %p148, %s143, 6
          %s150 = smul.addr %s149, 8
          %s151 = scalar_lea.vmem %s0, %s150
          %s152 = smul.u32 %s18, 2
          %s153 = sadd.s32 %s152, %s19
          %p154 = scmp.lt.s32.totalorder %s153, 3
          %s155 = scalar_select %p154, %s153, 3
          %s156 = smul.u32 2, %s155
          %s157 = ssub.s32 7, %s156
          %p158 = scmp.lt.s32.totalorder %s157, 2
          %s159 = scalar_select %p158, %s157, 2
          %s160 = smul.u32 128, %s159
        $region20: #{tpu_custom_call.1} parent=15 // pred_fallthru
          _
        // Predicated region
        $region21: #{tpu_custom_call.1} parent=15 // pred_check
          %p161 = pneg %p85
        $region22: #{tpu_custom_call.1} parent=15 // pred_check_branch
          %163 = sbr.rel (%p161) target = $region24
        $region23: #{tpu_custom_call.1} parent=15 // pred_region
          %s164 = smul.u32 %s18, 2
          %s165 = sadd.s32 %s164, %s19
          %p166 = scmp.lt.s32.totalorder %s165, 3
          %s167 = scalar_select %p166, %s165, 3
          %s168 = smul.u32 2, %s167
          %s169 = ssub.s32 7, %s168
          %p170 = scmp.lt.s32.totalorder %s169, 2
          %s171 = scalar_select %p170, %s169, 2
          %s172 = smul.u32 128, %s171
          %p173 = scmp.lt.s32.totalorder %s168, 6
          %s174 = scalar_select %p173, %s168, 6
          %s175 = smul.addr %s174, 8
          %s176 = scalar_lea.vmem %s1, %s175
          %s177 = smul.u32 %s18, 2
          %s178 = sadd.s32 %s177, %s19
          %p179 = scmp.lt.s32.totalorder %s178, 3
          %s180 = scalar_select %p179, %s178, 3
          %s181 = smul.u32 2, %s180
          %s182 = ssub.s32 7, %s181
          %p183 = scmp.lt.s32.totalorder %s182, 2
          %s184 = scalar_select %p183, %s182, 2
          %s185 = smul.u32 128, %s184
        $region24: #{tpu_custom_call.1} parent=15 // pred_fallthru
          _
      $region16: #{tpu_custom_call.1} parent=5 // pred_fallthru
        _
      %p186 = scmp.le.s32.totalorder 1, %s11
      %p187 = scmp.lt.s32.totalorder %s11, 5
      %p188 = pnand %p186, %p187
      %p189 = pneg %p188
      // Predicated region
      $region25: #{tpu_custom_call.1} parent=5 // pred_check
        _
      $region26: #{tpu_custom_call.1} parent=5 // pred_check_branch
        %191 = sbr.rel (%p188) target = $region28
      $region27: #{tpu_custom_call.1} parent=5 // pred_region
        %s192 = ssub.s32 %s11, 1
        %s193 = smul.u32 %s20, 2
        %s194 = sadd.s32 %s193, %s21
        %p195 = scmp.lt.s32.totalorder %s194, 3
        %s196 = scalar_select %p195, %s194, 3
        %s197 = smul.u32 2, %s196
        %s198 = ssub.s32 7, %s197
        %p199 = scmp.lt.s32.totalorder %s198, 2
        %s200 = scalar_select %p199, %s198, 2
        %s201 = smul.u32 128, %s200
        %p202 = scmp.lt.s32.totalorder %s197, 6
        %s203 = scalar_select %p202, %s197, 6
        %s204 = smul.addr %s203, 8
        %s205 = scalar_lea.vmem %s0, %s204
        %p206 = pneg %p57
        %p207 = pneg %p54
        %s208 = smul.u32 %s20, 2
        %s209 = sadd.s32 %s208, %s21
        %p210 = scmp.lt.s32.totalorder %s209, 3
        %s211 = scalar_select %p210, %s209, 3
        %s212 = smul.u32 2, %s211
        %s213 = ssub.s32 7, %s212
        %p214 = scmp.lt.s32.totalorder %s213, 2
        %s215 = scalar_select %p214, %s213, 2
        %s216 = smul.u32 128, %s215
        %p217 = scmp.lt.s32.totalorder %s212, 6
        %s218 = scalar_select %p217, %s212, 6
        %s219 = smul.addr %s218, 8
        %s220 = scalar_lea.vmem %s1, %s219
        %p221 = pneg %p91
        %p222 = pneg %p88
        %p223 = pneg %p117
        %p224 = pneg %p114
        %s225 = sand.u32 %s104, 1
        %s226 = scalar_lea.sflag [#allocation4], %s225
        %s227 = sand.u32 %s104, 1
        %s228 = scalar_lea.vmem [#allocation3], %s227
        %s229 = smul.u32 %s20, 2
        %s230 = sadd.s32 %s229, %s21
        %p231 = scmp.lt.s32.totalorder %s230, 3
        %s232 = scalar_select %p231, %s230, 3
        %s233 = smul.u32 2, %s232
        %s234 = ssub.s32 7, %s233
        %p235 = scmp.lt.s32.totalorder %s234, 2
        %s236 = scalar_select %p235, %s234, 2
        %s237 = smul.u32 128, %s236
        %p238 = scmp.lt.s32.totalorder %s233, 6
        %s239 = scalar_select %p238, %s233, 6
        %s240 = smul.addr %s239, 8
        %s241 = scalar_lea.vmem %s0, %s240
        %s242 = smul.u32 %s20, 2
        %s243 = sadd.s32 %s242, %s21
        %p244 = scmp.lt.s32.totalorder %s243, 3
        %s245 = scalar_select %p244, %s243, 3
        %s246 = smul.u32 2, %s245
        %s247 = ssub.s32 7, %s246
        %p248 = scmp.lt.s32.totalorder %s247, 2
        %s249 = scalar_select %p248, %s247, 2
        %s250 = smul.u32 128, %s249
        %s251 = smul.u32 %s20, 2
        %s252 = sadd.s32 %s251, %s21
        %p253 = scmp.lt.s32.totalorder %s252, 3
        %s254 = scalar_select %p253, %s252, 3
        %s255 = smul.u32 2, %s254
        %s256 = ssub.s32 7, %s255
        %p257 = scmp.lt.s32.totalorder %s256, 2
        %s258 = scalar_select %p257, %s256, 2
        %s259 = smul.u32 128, %s258
        %p260 = scmp.lt.s32.totalorder %s255, 6
        %s261 = scalar_select %p260, %s255, 6
        %s262 = smul.addr %s261, 8
        %s263 = scalar_lea.vmem %s1, %s262
        %s264 = smul.u32 %s20, 2
        %s265 = sadd.s32 %s264, %s21
        %p266 = scmp.lt.s32.totalorder %s265, 3
        %s267 = scalar_select %p266, %s265, 3
        %s268 = smul.u32 2, %s267
        %s269 = ssub.s32 7, %s268
        %p270 = scmp.lt.s32.totalorder %s269, 2
        %s271 = scalar_select %p270, %s269, 2
        %s272 = smul.u32 128, %s271
        %p273 = scmp.eq.s32.totalorder %s21, 0
        // Predicated region
        $region29: #{tpu_custom_call.1} parent=27 // pred_check
          %p274 = pneg %p273
        $region30: #{tpu_custom_call.1} parent=27 // pred_check_branch
          %276 = sbr.rel (%p274) target = $region32
        $region31: #{tpu_custom_call.1} parent=27 // pred_region
          %vm277 = vcmask 7168
          %278 = vst.msk [vmem:[#allocation2] sm:$0xff] %vm277, 0.0
          %279 = vst.msk [vmem:[#allocation2 + $0x8] sm:$0xff] %vm277, 0.0
        $region32: #{tpu_custom_call.1} parent=27 // pred_fallthru
          _
        %s280 = smul.u32 %s20, 2
        %s281 = sadd.s32 %s280, %s21
        %s282 = smul.u32 %s281, 16
        %v283 = vld [vmem:[%s241] sm:$0xff]
        %v284 = vld [vmem:[%s241 + $0x8] sm:$0xff]
        %vm285 = vcmask 261120
        %v286 = vsel %vm285, %v283, -inf
        %287 = vmax.xlane.f32.xlu0 %v286
        %v288 = vpop.xlane.xlu0 %287
        %v289 = vsel %vm285, %v284, -inf
        %290 = vmax.xlane.f32.xlu0 %v289
        %v291 = vpop.xlane.xlu0 %290
        %v292 = vsub.f32 %v283, %v288
        %v293 = vsub.f32 %v284, %v291
        %v294 = vmul.f32 %v292, 1.442695
        %v295 = vpow.pop %v294
        %v296 = vmul.f32 %v293, 1.442695
        %v297 = vpow.pop %v296
        %v298 = vsel %vm285, %v295, 0.0
        %299 = vadd.xlane.f32.xlu0 %v298
        %v300 = vpop.xlane.xlu0 %299
        %v301 = vsel %vm285, %v297, 0.0
        %302 = vadd.xlane.f32.xlu0 %v301
        %v303 = vpop.xlane.xlu0 %302
        %v304 = vlog2.pop %v300
        %v305 = vmul.f32 %v304, 0.6931472
        %v306 = vlog2.pop %v303
        %v307 = vmul.f32 %v306, 0.6931472
        %v308 = vld [vmem:[%s263] sm:$0xff]
        %v309 = vld [vmem:[%s263 + $0x8] sm:$0xff]
        %v310 = vlaneseq
        %v311 = vand.u32 %v310, 127
        %312 = vset.pattern.permute.xlu0 0
        %313 = vperm.xlu0 %312, %v308
        %v314 = vpop.permute.xlu0 %313
        %315 = vset.pattern.permute.xlu0 0
        %316 = vperm.xlu0 %315, %v309
        %v317 = vpop.permute.xlu0 %316
        %vm318 = vcmp.eq.s32.totalorder %v311, %v314
        %vm319 = vcmp.eq.s32.totalorder %v311, %v317
        %v320 = vsel %vm318, %v292, 0.0
        %v321 = vsel %vm319, %v293, 0.0
        %v322 = vsel %vm285, %v320, 0.0
        %323 = vadd.xlane.f32.xlu0 %v322
        %v324 = vpop.xlane.xlu0 %323
        %v325 = vsel %vm285, %v321, 0.0
        %326 = vadd.xlane.f32.xlu0 %v325
        %v327 = vpop.xlane.xlu0 %326
        %v328 = vsub.f32 %v324, %v305
        %v329 = vsub.f32 %v327, %v307
        %v330 = vmul.f32 %v328, 1.442695
        %v331 = vpow.pop %v330
        %v332 = vmul.f32 %v329, 1.442695
        %v333 = vpow.pop %v332
        %v334 = vsub.f32 1.0, %v331
        %v335 = vsub.f32 1.0, %v333
        %v336 = vmax.f32 %v334, 0.0
        %v337 = vmax.f32 %v335, 0.0
        %v338 = vmul.f32 %v336, %v336
        %v339 = vmul.f32 %v337, %v337
        %v340 = vmul.f32 %v338, %v328
        %v341 = vmul.f32 %v339, %v329
        %v342 = vlaneseq
        %v343 = vshrl.u32 %v342, 7
        %v344 = vadd.s32 %v343, 8
        %v345 = vstv %s282
        %v346 = vadd.s32 %v345, %v343
        %v347 = vadd.s32 %v345, %v344
        %v348 = vld [vmem:[#allocation2] sm:$0xff]
        %v349 = vld [vmem:[#allocation2 + $0x8] sm:$0xff]
        %vm350 = vcmp.lt.s32.totalorder %v346, 50
        %vm351 = vcmp.lt.s32.totalorder %v347, 50
        %v352 = vsel %vm350, %v340, 0.0
        %v353 = vsel %vm351, %v341, 0.0
        %v354 = vadd.f32 %v348, %v352
        %v355 = vadd.f32 %v349, %v353
        %vm356 = vcmask 7168
        %357 = vst.msk [vmem:[#allocation2] sm:$0xff] %vm356, %v354
        %358 = vst.msk [vmem:[#allocation2 + $0x8] sm:$0xff] %vm356, %v355
        %p359 = scmp.eq.s32.totalorder %s21, 1
        // Predicated region
        $region33: #{tpu_custom_call.1} parent=27 // pred_check
          %p360 = pneg %p359
        $region34: #{tpu_custom_call.1} parent=27 // pred_check_branch
          %362 = sbr.rel (%p360) target = $region36
        $region35: #{tpu_custom_call.1} parent=27 // pred_region
          %v363 = vld [vmem:[#allocation2] sm:$0xff]
          %v364 = vld [vmem:[#allocation2 + $0x8] sm:$0xff]
          %v365 = vsel %vm356, %v363, 0.0
          %v366 = vsel %vm356, %v364, 0.0
          %v367 = vadd.f32 %v365, %v366
          %368 = vadd.xlane.f32.xlu0 %v367
          %v369 = vpop.xlane.xlu0 %368
          %v370 = vrot.slane %v369, 4
          %v371 = vadd.f32 %v369, %v370
          %v372 = vrot.slane %v371, 2
          %v373 = vadd.f32 %v371, %v372
          %v374 = vrot.slane %v373, 1
          %v375 = vadd.f32 %v373, %v374
          %s376 = vtos %v375
          %s377 = ssub.f32 0.0, %s376
          %v378 = vstv %s377
          %379 = vst [vmem:[%s228] sm:$0x1] %v378
        $region36: #{tpu_custom_call.1} parent=27 // pred_fallthru
          _
        %s380 = sand.u32 %s104, 1
        %s381 = scalar_lea.sflag [#allocation4], %s380
        %s382 = sand.u32 %s104, 1
        %s383 = scalar_lea.vmem [#allocation3], %s382
        // Predicated region
        $region37: #{tpu_custom_call.1} parent=27 // pred_check
          %p384 = pneg %p114
        $region38: #{tpu_custom_call.1} parent=27 // pred_check_branch
          %386 = sbr.rel (%p384) target = $region40
        $region39: #{tpu_custom_call.1} parent=27 // pred_region
          %s388 = ssub.s32 16, 16
          %389 = vsyncadd %s381, %s388
          %s390 = smul.addr %s20, 16
          %s391 = scalar_lea.hbm %s2, %s390
          %s393 = sshll.u32 %s383, 4
          %s394 = int_to_ptr.vmem [resolvable:$true] %s393
          %396 = dma.vmem_to_hbm [thread:$0]  %s394, 16, %s391, %s381
        $region40: #{tpu_custom_call.1} parent=27 // pred_fallthru
          _
      $region28: #{tpu_custom_call.1} parent=5 // pred_fallthru
        _
      %p397 = scmp.le.s32.totalorder 2, %s11
      // Predicated region
      $region41: #{tpu_custom_call.1} parent=5 // pred_check
        %p398 = pneg %p397
      $region42: #{tpu_custom_call.1} parent=5 // pred_check_branch
        %400 = sbr.rel (%p398) target = $region44
      $region43: #{tpu_custom_call.1} parent=5 // pred_region
        %s401 = ssub.s32 %s11, 2
        // Predicated region
        $region45: #{tpu_custom_call.1} parent=43 // pred_check
          %p402 = pneg %p120
        $region46: #{tpu_custom_call.1} parent=43 // pred_check_branch
          %404 = sbr.rel (%p402) target = $region48
        $region47: #{tpu_custom_call.1} parent=43 // pred_region
          %s405 = sand.u32 %s105, 1
          %s406 = scalar_lea.sflag [#allocation4], %s405
          %s407 = sand.u32 %s105, 1
          %s408 = scalar_lea.vmem [#allocation3], %s407
          %409 = dma.done %s406, 16
        $region48: #{tpu_custom_call.1} parent=43 // pred_fallthru
          _
      $region44: #{tpu_custom_call.1} parent=5 // pred_fallthru
        _
    $region6: #{tpu_custom_call.1} parent=1 // loop_footer
      %s15 = sadd.s32 1, %s11
    $region7: #{tpu_custom_call.1} parent=1 // loop_footer_branch
      %10 = sbr.rel target = $region3
    $region8: #{tpu_custom_call.1} parent=1 // loop_exit
      _
    %410 = vsyncpa [#allocation4], 1
    %s411 = scalar_lea.sflag [#allocation4], 1
    %412 = vsyncpa %s411, 1

</llo_original>
